<compile_context>
chip_gen: v7x
topology: tpu7x:2x2x1
jax: 0.10.0
libtpu: 0.0.40
codegen_flags: <defaults>
</compile_context>

<pallas_src>
import math

import jax
import jax.numpy as jnp
from jax import lax
from jax.experimental import pallas as pl
from jax.experimental.pallas import tpu as pltpu

OFFSET_Z = 5.0             # SoftRas.offset_z
EYE = (0.0, 0.0, -2.732)   # SoftRas.eye
VIEW_ANGLE_DEG = 30.0      # SoftRas.viewing_angle
SIGMA = 1e-5               # soft_renderer default sigma_val (silhouette sharpness)

HALF_INV_SIGMA = 0.5 / SIGMA
TANW = math.tan(VIEW_ANGLE_DEG * math.pi / 180.0)
MIN_Z = 1e-3               # clamp for the perspective divide (documented deviation)
DEGENERATE_EPS = 1e-10     # |area| below this -> face contributes nothing
NC = 27                    # per-face constants packed in SMEM (see _build_face_table)


# -----------------------------------------------------------------------------
# Kernel 1: vertex projection
# -----------------------------------------------------------------------------
def _make_proj_kernel(nr):
    """orthographic_proj_withz + y-flip + look_at(eye) + perspective(30 deg).

    cam_ref: SMEM f32[B, 7]        [scale, tx, ty, qw, qx, qy, qz]
    v_ref:   VMEM f32[3*nr, 128]   rows [0:nr]=x, [nr:2nr]=y, [2nr:3nr]=z
    o_ref:   VMEM f32[2*nr, 128]   rows [0:nr]=screen x, [nr:2nr]=screen y
    """

    def kernel(cam_ref, v_ref, o_ref):
        b = pl.program_id(0)
        # camera params as SMEM scalars (splat for free into vector ops)
        s = cam_ref[b, 0]
        tx = cam_ref[b, 1]
        ty = cam_ref[b, 2]
        qw = cam_ref[b, 3]
        qx = cam_ref[b, 4]
        qy = cam_ref[b, 5]
        qz = cam_ref[b, 6]

        x = v_ref[0:nr, :]
        y = v_ref[nr:2 * nr, :]
        z = v_ref[2 * nr:3 * nr, :]

        # X_rot = q * (0, x, y, z) * conj(q)  (vector part); pure VPU elementwise.
        t0 = x * qx + y * qy + z * qz
        t1 = x * qw - y * qz + z * qy
        t2 = x * qz + y * qw - z * qx
        t3 = -x * qy + y * qx + z * qw
        rx = qw * t1 + qx * t0 + qy * t3 - qz * t2
        ry = qw * t2 - qx * t3 + qy * t0 + qz * t1
        rz = qw * t3 + qx * t2 - qy * t1 + qz * t0

        # orthographic_proj_withz
        px = s * rx + tx
        py = -(s * ry + ty)                 # forward(): vertices[:, :, 1] *= -1
        pz = s * rz + OFFSET_Z
        # look_at with eye on -z axis, at=origin, up=+y  ->  identity rotation
        px = px - EYE[0]
        py = py - EYE[1]
        pz = pz - EYE[2]
        # perspective(angle=30), depth clamped to guard near/behind-eye vertices
        inv = 1.0 / (jnp.maximum(pz, MIN_Z) * TANW)
        o_ref[0:nr, :] = px * inv
        o_ref[nr:2 * nr, :] = py * inv

    return kernel


# -----------------------------------------------------------------------------
# Kernel 2: soft rasterization (silhouette)
# -----------------------------------------------------------------------------
def _make_raster_kernel(F, H, W, trows):
    tpix = trows * 128
    inv_w = 1.0 / W
    inv_h = 1.0 / H
    w_pow2 = (W & (W - 1)) == 0
    w_shift = max(W.bit_length() - 1, 0)
    unroll = True if F <= 16 else 4

    def kernel(face_ref, o_ref):
        # face_ref: SMEM f32[B, F*NC] per-face constants (whole table resident)
        # o_ref:    VMEM f32[trows, 128] lane-dense pixel tile
        b = pl.program_id(0)
        t = pl.program_id(1)

        # lane-dense pixel tile: linear pixel id = t*tpix + sublane*128 + lane
        row = lax.broadcasted_iota(jnp.int32, (trows, 128), 0)
        lane = lax.broadcasted_iota(jnp.int32, (trows, 128), 1)
        pix = t * tpix + row * 128 + lane
        if w_pow2:
            iy = pix >> w_shift
            ix = pix & (W - 1)
        else:
            iy = pix // W
            ix = pix - iy * W
        # pixel centers in [-1, 1]; row 0 = top of image (y up in screen space)
        px = (2.0 * ix.astype(jnp.float32) + 1.0) * inv_w - 1.0
        py = 1.0 - (2.0 * iy.astype(jnp.float32) + 1.0) * inv_h

        def seg_d2(dx, dy, ex, ey, gx, gy):
            # squared distance from p to segment a->b; (gx,gy) = (ex,ey)/|e|^2
            tp = jnp.clip(dx * gx + dy * gy, 0.0, 1.0)
            cx = dx - tp * ex
            cy = dy - tp * ey
            return cx * cx + cy * cy

        def face_body(f, prod):
            base = f * NC
            c = lambda k: face_ref[b, base + k]   # SMEM scalar splat

            # per-vertex deltas, shared by edge functions and distances (CSE)
            dx0 = px - c(0)
            dy0 = py - c(1)
            dx1 = px - c(2)
            dy1 = py - c(3)
            dx2 = px - c(4)
            dy2 = py - c(5)

            # oriented edge functions (host folded sign(area) into the normals):
            # inside  <=>  min(e0, e1, e2) >= 0, regardless of winding.
            e0 = c(18) * dx0 + c(19) * dy0
            e1 = c(20) * dx1 + c(21) * dy1
            e2 = c(22) * dx2 + c(23) * dy2
            inside = jnp.minimum(jnp.minimum(e0, e1), e2) >= 0.0

            # squared distance to the triangle boundary
            d2 = jnp.minimum(
                seg_d2(dx0, dy0, c(6), c(7), c(8), c(9)),
                jnp.minimum(seg_d2(dx1, dy1, c(10), c(11), c(12), c(13)),
                            seg_d2(dx2, dy2, c(14), c(15), c(16), c(17))))

            # 1 - sigmoid(sgn*d2/sigma) == 0.5 - 0.5*tanh(sgn*d2/(2*sigma))
            # sp = valid*(+0.5/sigma), sn = valid*(-0.5/sigma), vbias = 0 / -30
            # so degenerate faces give arg = -30 -> factor 1.0.
            arg = jnp.where(inside, c(24), c(25)) * d2 + c(26)
            return prod * (0.5 - 0.5 * jnp.tanh(arg))

        prod = lax.fori_loop(0, F, face_body,
                             jnp.ones((trows, 128), jnp.float32),
                             unroll=unroll)
        # silhouette aggregation: alpha = 1 - prod_f (1 - D_f)
        o_ref[...] = 1.0 - prod

    return kernel


# -----------------------------------------------------------------------------
# Wrapper
# -----------------------------------------------------------------------------
def _choose_trows(prows, batch):
    """Pixel-rows per raster tile.  16 rows keeps ~15 live (trows,128) f32
    temporaries at ~2 vregs each (no spills under the unrolled face loop);
    tiny images get the whole per-batch image in one tile."""
    if prows <= 16:
        trows = prows
    elif prows % 16 == 0:
        trows = 16
    else:
        trows = 8                      # prows padded up to a multiple below
    # v7x has 2 TensorCores sharing the grid: make sure there are >=2 grid
    # steps when possible so neither core idles.
    if batch * pl.cdiv(prows, trows) < 2 and trows >= 16:
        trows //= 2
    return trows


def _build_face_table(sx, sy, faces):
    """Gather per-face screen coords + hoisted/oriented edge constants.

    Layout per face (NC=27 floats):
      0..5   x0 y0 x1 y1 x2 y2
      6..9   e01x e01y g01x g01y      (g = e / |e|^2)
      10..13 e12x e12y g12x g12y
      14..17 e20x e20y g20x g20y
      18..23 n0x n0y n1x n1y n2x n2y  (oriented normals: e_k = n_kx*dx+n_ky*dy)
      24..26 sp sn vbias              (sp = valid*0.5/sigma, sn = -sp)
    """
    f0, f1, f2 = faces[:, :, 0], faces[:, :, 1], faces[:, :, 2]
    x0 = jnp.take_along_axis(sx, f0, axis=1)
    y0 = jnp.take_along_axis(sy, f0, axis=1)
    x1 = jnp.take_along_axis(sx, f1, axis=1)
    y1 = jnp.take_along_axis(sy, f1, axis=1)
    x2 = jnp.take_along_axis(sx, f2, axis=1)
    y2 = jnp.take_along_axis(sy, f2, axis=1)

    e01x, e01y = x1 - x0, y1 - y0
    e12x, e12y = x2 - x1, y2 - y1
    e20x, e20y = x0 - x2, y0 - y2
    il01 = 1.0 / (e01x * e01x + e01y * e01y + 1e-12)
    il12 = 1.0 / (e12x * e12x + e12y * e12y + 1e-12)
    il20 = 1.0 / (e20x * e20x + e20y * e20y + 1e-12)
    g01x, g01y = e01x * il01, e01y * il01
    g12x, g12y = e12x * il12, e12y * il12
    g20x, g20y = e20x * il20, e20y * il20

    area = e01x * (y2 - y0) - e01y * (x2 - x0)
    sgn = jnp.where(area >= 0.0, 1.0, -1.0)
    # oriented edge normals: e_k = n_kx*dx_k + n_ky*dy_k = sgn*(e_kx*dy - e_ky*dx)
    n0x, n0y = -sgn * e01y, sgn * e01x
    n1x, n1y = -sgn * e12y, sgn * e12x
    n2x, n2y = -sgn * e20y, sgn * e20x

    valid = (jnp.abs(area) > DEGENERATE_EPS).astype(jnp.float32)
    sp = valid * HALF_INV_SIGMA
    sn = -sp
    vbias = (valid - 1.0) * 30.0        # 0 valid / -30 degenerate -> factor 1.0

    tbl = jnp.stack([x0, y0, x1, y1, x2, y2,
                     e01x, e01y, g01x, g01y,
                     e12x, e12y, g12x, g12y,
                     e20x, e20y, g20x, g20y,
                     n0x, n0y, n1x, n1y, n2x, n2y,
                     sp, sn, vbias], axis=-1)             # (B, F, NC)
    B, F = f0.shape
    return tbl.reshape(B, F * NC).astype(jnp.float32)


def softras_forward(vertices, faces, cams, img_size=16):
    """vertices: (B, N, 3) f32, faces: (B, F, 3) int32, cams: (B, 7) f32.
    Returns silhouette (B, H, W) f32 == rgba[:, 3, :, :]."""
    vertices = vertices.astype(jnp.float32)
    cams = cams.astype(jnp.float32)
    faces = faces.astype(jnp.int32)
    B, N, _ = vertices.shape
    F = faces.shape[1]
    H = W = img_size

    # --- projection kernel: lane-dense (3*Nr, 128) coordinate-plane layout ----
    Nr = pl.cdiv(N, 128)
    Np = Nr * 128
    verts_c = jnp.transpose(vertices, (0, 2, 1))           # (B, 3, N)
    verts_c = jnp.pad(verts_c, ((0, 0), (0, 0), (0, Np - N)))
    verts_c = verts_c.reshape(B, 3 * Nr, 128)              # x | y | z row groups

    proj = pl.pallas_call(
        _make_proj_kernel(Nr),
        grid=(B,),
        in_specs=[
            pl.BlockSpec(memory_space=pltpu.MemorySpace.SMEM),        # cams (B,7)
            pl.BlockSpec((None, 3 * Nr, 128), lambda b: (b, 0, 0)),   # verts
        ],
        out_specs=pl.BlockSpec((None, 2 * Nr, 128), lambda b: (b, 0, 0)),
        out_shape=jax.ShapeDtypeStruct((B, 2 * Nr, 128), jnp.float32),
        compiler_params=pltpu.CompilerParams(
            dimension_semantics=("parallel",)),
    )(cams, verts_c)                                        # (B, 2*Nr, 128)
    proj = proj.reshape(B, 2, Nr * 128)[:, :, :N]
    sx, sy = proj[:, 0, :], proj[:, 1, :]

    # --- glue: gather per-face coords + hoist/orient per-face edge constants --
    face_tbl = _build_face_table(sx, sy, faces)             # (B, F*NC) -> SMEM

    # --- soft rasterization: lane-dense (pixel-rows, 128) layout --------------
    P = H * W
    prows = pl.cdiv(P, 128)             # pixel count padded to a multiple of 128
    trows = _choose_trows(prows, B)
    ntiles = pl.cdiv(prows, trows)
    prows_pad = ntiles * trows

    sil_flat = pl.pallas_call(
        _make_raster_kernel(F, H, W, trows),
        grid=(B, ntiles),
        in_specs=[pl.BlockSpec(memory_space=pltpu.MemorySpace.SMEM)],
        out_specs=pl.BlockSpec((None, trows, 128), lambda b, t: (b, t, 0)),
        out_shape=jax.ShapeDtypeStruct((B, prows_pad, 128), jnp.float32),
        compiler_params=pltpu.CompilerParams(
            dimension_semantics=("parallel", "parallel")),
    )(face_tbl)                                             # (B, prows_pad, 128)

    sil = sil_flat.reshape(B, prows_pad * 128)[:, :P].reshape(B, H, W)
    return sil


if __name__ == "__main__":
    key = jax.random.PRNGKey(0)
    B, N, F, IMG = 2, 8, 8, 16

    # octahedron (6 verts, 8 faces), padded to N=8 vertices, small random jitter
    octa = jnp.array(
        [[1, 0, 0], [-1, 0, 0], [0, 1, 0], [0, -1, 0],
         [0, 0, 1], [0, 0, -1], [1, 0, 0], [0, 1, 0]], jnp.float32)
    k1, k2, k3, k4 = jax.random.split(key, 4)
    verts = octa[None] + 0.05 * jax.random.normal(k1, (B, N, 3), jnp.float32)

    faces = jnp.array(
        [[0, 2, 4], [2, 1, 4], [1, 3, 4], [3, 0, 4],
         [2, 0, 5], [1, 2, 5], [3, 1, 5], [0, 3, 5]], jnp.int32)
    faces = jnp.broadcast_to(faces[None], (B, F, 3))

    # cams: [scale, tx, ty, qw, qx, qy, qz] with a normalized quaternion
    scale = 1.5 + 0.2 * jax.random.uniform(k2, (B, 1), jnp.float32)
    trans = 0.1 * jax.random.normal(k3, (B, 2), jnp.float32)
    quat = jax.random.normal(k4, (B, 4), jnp.float32)
    quat = quat / jnp.linalg.norm(quat, axis=-1, keepdims=True)
    cams = jnp.concatenate([scale, trans, quat], axis=-1)

    sil = softras_forward(verts, faces, cams, img_size=IMG)
    sil = jax.block_until_ready(sil)

    assert sil.shape == (B, IMG, IMG), sil.shape
    assert bool(jnp.all(jnp.isfinite(sil)))
    assert bool(jnp.all((sil >= 0.0) & (sil <= 1.0)))
    print("KERNEL_OK")
</pallas_src>

<mosaic_0001>
module attributes {stable_mosaic.version = 11 : i64} {
  func.func @kernel(%arg0: i32, %arg1: memref<2x7xf32, #tpu.memory_space<smem>>, %arg2: memref<1x3x128xf32, #tpu.memory_space<vmem>>, %arg3: memref<1x2x128xf32, #tpu.memory_space<vmem>>) attributes {dimension_semantics = [#tpu.dimension_semantics<parallel>], iteration_bounds = array<i64: 2>, scalar_prefetch = 0 : i64, scratch_operands = 0 : i64, tpu.core_type = #tpu.core_type<tc>, window_params = [{transform_indices = @transform_0, window_bounds = array<i64: 2, 7>}, {transform_indices = @transform_1, window_bounds = array<i64: 1, 3, 128>}, {transform_indices = @transform_2, window_bounds = array<i64: 1, 2, 128>}]} {
    %0 = arith.index_cast %arg0 : i32 to index
    %c0 = arith.constant 0 : index
    %1 = memref.load %arg1[%0, %c0] : memref<2x7xf32, #tpu.memory_space<smem>>
    %2 = arith.index_cast %arg0 : i32 to index
    %c1 = arith.constant 1 : index
    %3 = memref.load %arg1[%2, %c1] : memref<2x7xf32, #tpu.memory_space<smem>>
    %4 = arith.index_cast %arg0 : i32 to index
    %c2 = arith.constant 2 : index
    %5 = memref.load %arg1[%4, %c2] : memref<2x7xf32, #tpu.memory_space<smem>>
    %6 = arith.index_cast %arg0 : i32 to index
    %c3 = arith.constant 3 : index
    %7 = memref.load %arg1[%6, %c3] : memref<2x7xf32, #tpu.memory_space<smem>>
    %8 = arith.index_cast %arg0 : i32 to index
    %c4 = arith.constant 4 : index
    %9 = memref.load %arg1[%8, %c4] : memref<2x7xf32, #tpu.memory_space<smem>>
    %10 = arith.index_cast %arg0 : i32 to index
    %c5 = arith.constant 5 : index
    %11 = memref.load %arg1[%10, %c5] : memref<2x7xf32, #tpu.memory_space<smem>>
    %12 = arith.index_cast %arg0 : i32 to index
    %c6 = arith.constant 6 : index
    %13 = memref.load %arg1[%12, %c6] : memref<2x7xf32, #tpu.memory_space<smem>>
    %c0_0 = arith.constant 0 : index
    %c0_1 = arith.constant 0 : index
    %c0_2 = arith.constant 0 : index
    %14 = vector.load %arg2[%c0_0, %c0_1, %c0_2] : memref<1x3x128xf32, #tpu.memory_space<vmem>>, vector<1x1x128xf32>
    %15 = vector.shape_cast %14 : vector<1x1x128xf32> to vector<1x128xf32>
    %c0_3 = arith.constant 0 : index
    %c1_4 = arith.constant 1 : index
    %c0_5 = arith.constant 0 : index
    %16 = vector.load %arg2[%c0_3, %c1_4, %c0_5] : memref<1x3x128xf32, #tpu.memory_space<vmem>>, vector<1x1x128xf32>
    %17 = vector.shape_cast %16 : vector<1x1x128xf32> to vector<1x128xf32>
    %c0_6 = arith.constant 0 : index
    %c2_7 = arith.constant 2 : index
    %c0_8 = arith.constant 0 : index
    %18 = vector.load %arg2[%c0_6, %c2_7, %c0_8] : memref<1x3x128xf32, #tpu.memory_space<vmem>>, vector<1x1x128xf32>
    %19 = vector.shape_cast %18 : vector<1x1x128xf32> to vector<1x128xf32>
    %20 = vector.broadcast %9 : f32 to vector<1x128xf32>
    %21 = arith.mulf %15, %20 : vector<1x128xf32>
    %22 = vector.broadcast %11 : f32 to vector<1x128xf32>
    %23 = arith.mulf %17, %22 : vector<1x128xf32>
    %24 = arith.addf %21, %23 : vector<1x128xf32>
    %25 = vector.broadcast %13 : f32 to vector<1x128xf32>
    %26 = arith.mulf %19, %25 : vector<1x128xf32>
    %27 = arith.addf %24, %26 : vector<1x128xf32>
    %28 = vector.broadcast %7 : f32 to vector<1x128xf32>
    %29 = arith.mulf %15, %28 : vector<1x128xf32>
    %30 = vector.broadcast %13 : f32 to vector<1x128xf32>
    %31 = arith.mulf %17, %30 : vector<1x128xf32>
    %32 = arith.subf %29, %31 : vector<1x128xf32>
    %33 = vector.broadcast %11 : f32 to vector<1x128xf32>
    %34 = arith.mulf %19, %33 : vector<1x128xf32>
    %35 = arith.addf %32, %34 : vector<1x128xf32>
    %36 = vector.broadcast %13 : f32 to vector<1x128xf32>
    %37 = arith.mulf %15, %36 : vector<1x128xf32>
    %38 = vector.broadcast %7 : f32 to vector<1x128xf32>
    %39 = arith.mulf %17, %38 : vector<1x128xf32>
    %40 = arith.addf %37, %39 : vector<1x128xf32>
    %41 = vector.broadcast %9 : f32 to vector<1x128xf32>
    %42 = arith.mulf %19, %41 : vector<1x128xf32>
    %43 = arith.subf %40, %42 : vector<1x128xf32>
    %cst = arith.constant 0.000000e+00 : f32
    %44 = vector.broadcast %cst : f32 to vector<1x128xf32>
    %45 = arith.subf %44, %15 : vector<1x128xf32>
    %46 = vector.broadcast %11 : f32 to vector<1x128xf32>
    %47 = arith.mulf %45, %46 : vector<1x128xf32>
    %48 = vector.broadcast %9 : f32 to vector<1x128xf32>
    %49 = arith.mulf %17, %48 : vector<1x128xf32>
    %50 = arith.addf %47, %49 : vector<1x128xf32>
    %51 = vector.broadcast %7 : f32 to vector<1x128xf32>
    %52 = arith.mulf %19, %51 : vector<1x128xf32>
    %53 = arith.addf %50, %52 : vector<1x128xf32>
    %54 = vector.broadcast %7 : f32 to vector<1x128xf32>
    %55 = arith.mulf %54, %35 : vector<1x128xf32>
    %56 = vector.broadcast %9 : f32 to vector<1x128xf32>
    %57 = arith.mulf %56, %27 : vector<1x128xf32>
    %58 = arith.addf %55, %57 : vector<1x128xf32>
    %59 = vector.broadcast %11 : f32 to vector<1x128xf32>
    %60 = arith.mulf %59, %53 : vector<1x128xf32>
    %61 = arith.addf %58, %60 : vector<1x128xf32>
    %62 = vector.broadcast %13 : f32 to vector<1x128xf32>
    %63 = arith.mulf %62, %43 : vector<1x128xf32>
    %64 = arith.subf %61, %63 : vector<1x128xf32>
    %65 = vector.broadcast %7 : f32 to vector<1x128xf32>
    %66 = arith.mulf %65, %43 : vector<1x128xf32>
    %67 = vector.broadcast %9 : f32 to vector<1x128xf32>
    %68 = arith.mulf %67, %53 : vector<1x128xf32>
    %69 = arith.subf %66, %68 : vector<1x128xf32>
    %70 = vector.broadcast %11 : f32 to vector<1x128xf32>
    %71 = arith.mulf %70, %27 : vector<1x128xf32>
    %72 = arith.addf %69, %71 : vector<1x128xf32>
    %73 = vector.broadcast %13 : f32 to vector<1x128xf32>
    %74 = arith.mulf %73, %35 : vector<1x128xf32>
    %75 = arith.addf %72, %74 : vector<1x128xf32>
    %76 = vector.broadcast %7 : f32 to vector<1x128xf32>
    %77 = arith.mulf %76, %53 : vector<1x128xf32>
    %78 = vector.broadcast %9 : f32 to vector<1x128xf32>
    %79 = arith.mulf %78, %43 : vector<1x128xf32>
    %80 = arith.addf %77, %79 : vector<1x128xf32>
    %81 = vector.broadcast %11 : f32 to vector<1x128xf32>
    %82 = arith.mulf %81, %35 : vector<1x128xf32>
    %83 = arith.subf %80, %82 : vector<1x128xf32>
    %84 = vector.broadcast %13 : f32 to vector<1x128xf32>
    %85 = arith.mulf %84, %27 : vector<1x128xf32>
    %86 = arith.addf %83, %85 : vector<1x128xf32>
    %87 = vector.broadcast %1 : f32 to vector<1x128xf32>
    %88 = arith.mulf %87, %64 : vector<1x128xf32>
    %89 = vector.broadcast %3 : f32 to vector<1x128xf32>
    %90 = arith.addf %88, %89 : vector<1x128xf32>
    %91 = vector.broadcast %1 : f32 to vector<1x128xf32>
    %92 = arith.mulf %91, %75 : vector<1x128xf32>
    %93 = vector.broadcast %5 : f32 to vector<1x128xf32>
    %94 = arith.addf %92, %93 : vector<1x128xf32>
    %cst_9 = arith.constant 0.000000e+00 : f32
    %95 = vector.broadcast %cst_9 : f32 to vector<1x128xf32>
    %96 = arith.subf %95, %94 : vector<1x128xf32>
    %97 = vector.broadcast %1 : f32 to vector<1x128xf32>
    %98 = arith.mulf %97, %86 : vector<1x128xf32>
    %cst_10 = arith.constant 5.000000e+00 : f32
    %99 = vector.broadcast %cst_10 : f32 to vector<1x128xf32>
    %100 = arith.addf %98, %99 : vector<1x128xf32>
    %cst_11 = arith.constant 0.000000e+00 : f32
    %101 = vector.broadcast %cst_11 : f32 to vector<1x128xf32>
    %102 = arith.subf %90, %101 : vector<1x128xf32>
    %cst_12 = arith.constant 0.000000e+00 : f32
    %103 = vector.broadcast %cst_12 : f32 to vector<1x128xf32>
    %104 = arith.subf %96, %103 : vector<1x128xf32>
    %cst_13 = arith.constant -2.732000e+00 : f32
    %105 = vector.broadcast %cst_13 : f32 to vector<1x128xf32>
    %106 = arith.subf %100, %105 : vector<1x128xf32>
    %cst_14 = arith.constant 1.000000e-03 : f32
    %107 = vector.broadcast %cst_14 : f32 to vector<1x128xf32>
    %108 = arith.maximumf %106, %107 : vector<1x128xf32>
    %cst_15 = arith.constant 0.577350259 : f32
    %109 = vector.broadcast %cst_15 : f32 to vector<1x128xf32>
    %110 = arith.mulf %108, %109 : vector<1x128xf32>
    %cst_16 = arith.constant 1.000000e+00 : f32
    %111 = vector.broadcast %cst_16 : f32 to vector<1x128xf32>
    %112 = arith.divf %111, %110 : vector<1x128xf32>
    %113 = arith.mulf %102, %112 : vector<1x128xf32>
    %c0_17 = arith.constant 0 : index
    %c0_18 = arith.constant 0 : index
    %c0_19 = arith.constant 0 : index
    %114 = vector.load %arg3[%c0_17, %c0_18, %c0_19] : memref<1x2x128xf32, #tpu.memory_space<vmem>>, vector<1x1x128xf32>
    %115 = vector.shape_cast %114 : vector<1x1x128xf32> to vector<1x128xf32>
    %116 = vector.shape_cast %113 : vector<1x128xf32> to vector<1x1x128xf32>
    tpu.vector_store %arg3[%c0_17, %c0_18, %c0_19], %116 {strides = array<i32>} : memref<1x2x128xf32, #tpu.memory_space<vmem>>, vector<1x1x128xf32>,
    %117 = arith.mulf %104, %112 : vector<1x128xf32>
    %c0_20 = arith.constant 0 : index
    %c1_21 = arith.constant 1 : index
    %c0_22 = arith.constant 0 : index
    %118 = vector.load %arg3[%c0_20, %c1_21, %c0_22] : memref<1x2x128xf32, #tpu.memory_space<vmem>>, vector<1x1x128xf32>
    %119 = vector.shape_cast %118 : vector<1x1x128xf32> to vector<1x128xf32>
    %120 = vector.shape_cast %117 : vector<1x128xf32> to vector<1x1x128xf32>
    tpu.vector_store %arg3[%c0_20, %c1_21, %c0_22], %120 {strides = array<i32>} : memref<1x2x128xf32, #tpu.memory_space<vmem>>, vector<1x1x128xf32>,
    return
  }
  func.func @transform_0(%arg0: i32) -> (i32, i32) {
    %c0_i32 = arith.constant 0 : i32
    %c0_i32_0 = arith.constant 0 : i32
    %c0_i32_1 = arith.constant 0 : i32
    return %c0_i32, %c0_i32_0 : i32, i32
  }
  func.func @transform_1(%arg0: i32) -> (i32, i32, i32) {
    %c0_i32 = arith.constant 0 : i32
    %c0_i32_0 = arith.constant 0 : i32
    %c0_i32_1 = arith.constant 0 : i32
    return %arg0, %c0_i32, %c0_i32_0 : i32, i32, i32
  }
  func.func @transform_2(%arg0: i32) -> (i32, i32, i32) {
    %c0_i32 = arith.constant 0 : i32
    %c0_i32_0 = arith.constant 0 : i32
    %c0_i32_1 = arith.constant 0 : i32
    return %arg0, %c0_i32, %c0_i32_0 : i32, i32, i32
  }
}

</mosaic_0001>

<llo_original>
// kernel: tpu_custom_call.1
$region0: #{tpu_custom_call.1}
  #allocation0 [shape = 'u32[]', space=smem, size = 0x4, offset = 0x4, fixed_abs, tag = 'smem constant byte address 0x4 - core index']
  #allocation1 [shape = 'u32[144,128]{1,0:T(1,128)}', space=vmem, size = 0x12000, scoped, tag = 'internal scratch']
  %s0 = inlined_call_operand.vmem [shape: f32[2,7], index: 0, kind: input, shape index: {}]
  %s1 = inlined_call_operand.vmem [shape: f32[2,3,128], index: 1, kind: input, shape index: {}]
  %s2 = inlined_call_operand.hbm [shape: f32[2,2,128], index: 2, kind: output, shape index: {}]
  %s3 = sld [smem:[#allocation0]]
  $region45: #{tpu_custom_call.1} parent=0
    _
  %s5 = ssub.s32 1, %s3
  %s6 = scalar_select 0, %s5, %s3
  $region1: #{tpu_custom_call.1} parent=0
    #allocation2 [shape = 'u8[1024]{0}', space=smem, size = 0x400, scoped, tag = 'input window, operand 0, single buffered']
    #allocation3 [shape = 's32[2]{0}', space=sflag, size = 0x8, scoped, tag = 'scoped memory for tpu_custom_call.1']
    #allocation4 [shape = 's32[2]{0}', space=sflag, size = 0x8, scoped, tag = 'scoped memory for tpu_custom_call.1']
    #allocation5 [shape = 'u8[2048]{0}', space=vmem, size = 0x800, scoped, tag = 'output window, operand 0']
    %7 = vsyncpa [#allocation4], 0
    %8 = vsyncpa [#allocation3], 0
    %s9 = scalar_lea.sflag [#allocation3], 1
    %10 = vsyncpa %s9, 0
    loop: start=0, step=1, limit=4
    $region2: #{tpu_custom_call.1} parent=1 // loop_pre_header
      _
    $region3: #{tpu_custom_call.1} parent=1 // loop_header
      %s12 = sphi 0, %s16
      %p13 = scmp.ge.s32.totalorder %s12, 4
      %s20 = sphi 0, %s20
      %s22 = sphi 0, %s20
      %s23 = sphi 0, %s22
      %s37 = sphi 0, %s23
      %s43 = sphi 0, %s45
      %s46 = sphi 0, %s43
      %s47 = sphi 0, %s46
      %s63 = sphi 0, %s47
      %s69 = sphi 0, %s71
      %s72 = sphi 0, %s69
      %s73 = sphi 0, %s72
      %s89 = sphi 0, %s73
    $region4: #{tpu_custom_call.1} parent=1 // loop_header_branch
      %15 = sbr.rel (%p13) target = $region8
    $region5: #{tpu_custom_call.1} parent=1 // loop_body
      %s17 = ssub.s32 %s12, 1
      %s18 = ssub.s32 %s12, 2
      %s19 = sadd.s32 %s12, 1
      %s21 = sadd.s32 %s20, 1
      %p24 = scmp.eq.s32.totalorder %s12, 1
      %p25 = scmp.ne.s32.totalorder %s20, %s22
      %p26 = scmp.eq.s32.totalorder %s12, 0
      %p27 = por %p25, %p26
      %p28 = scmp.ne.s32.totalorder %s20, %s22
      %p29 = scmp.eq.s32.totalorder %s17, 1
      %p30 = por %p28, %p29
      %p31 = scmp.ne.s32.totalorder %s22, %s23
      %p32 = scmp.eq.s32.totalorder %s17, 0
      %p33 = por %p31, %p32
      %p34 = scmp.ne.s32.totalorder %s22, %s23
      %p35 = scmp.eq.s32.totalorder %s18, 1
      %p36 = por %p34, %p35
      %p38 = scmp.ne.s32.totalorder %s23, %s37
      %p39 = scmp.eq.s32.totalorder %s18, 0
      %p40 = por %p38, %p39
      %s41 = ssub.s32 %s12, %s19
      %p42 = scmp.eq.s32.totalorder %s41, 0
      %s44 = sadd.s32 %s43, 1
      %s45 = scalar_select %p42, %s43, %s44
      %p48 = pneg %p42
      %p49 = scmp.eq.s32.totalorder %s12, 1
      %p50 = por %p48, %p49
      %p51 = scmp.ne.s32.totalorder %s43, %s46
      %p52 = scmp.eq.s32.totalorder %s12, 0
      %p53 = por %p51, %p52
      %p54 = scmp.ne.s32.totalorder %s43, %s46
      %p55 = scmp.eq.s32.totalorder %s17, 1
      %p56 = por %p54, %p55
      %p57 = scmp.ne.s32.totalorder %s46, %s47
      %p58 = scmp.eq.s32.totalorder %s17, 0
      %p59 = por %p57, %p58
      %p60 = scmp.ne.s32.totalorder %s46, %s47
      %p61 = scmp.eq.s32.totalorder %s18, 1
      %p62 = por %p60, %p61
      %p64 = scmp.ne.s32.totalorder %s47, %s63
      %p65 = scmp.eq.s32.totalorder %s18, 0
      %p66 = por %p64, %p65
      %s67 = ssub.s32 %s12, %s19
      %p68 = scmp.eq.s32.totalorder %s67, 0
      %s70 = sadd.s32 %s69, 1
      %s71 = scalar_select %p68, %s69, %s70
      %p74 = pneg %p68
      %p75 = scmp.eq.s32.totalorder %s12, 1
      %p76 = por %p74, %p75
      %p77 = scmp.ne.s32.totalorder %s69, %s72
      %p78 = scmp.eq.s32.totalorder %s12, 0
      %p79 = por %p77, %p78
      %p80 = scmp.ne.s32.totalorder %s69, %s72
      %p81 = scmp.eq.s32.totalorder %s17, 1
      %p82 = por %p80, %p81
      %p83 = scmp.ne.s32.totalorder %s72, %s73
      %p84 = scmp.eq.s32.totalorder %s17, 0
      %p85 = por %p83, %p84
      %p86 = scmp.ne.s32.totalorder %s72, %s73
      %p87 = scmp.eq.s32.totalorder %s18, 1
      %p88 = por %p86, %p87
      %p90 = scmp.ne.s32.totalorder %s73, %s89
      %p91 = scmp.eq.s32.totalorder %s18, 0
      %p92 = por %p90, %p91
      %p93 = scmp.le.s32.totalorder 1, %s12
      %p94 = scmp.lt.s32.totalorder %s12, 3
      %p95 = pnand %p93, %p94
      %p96 = pneg %p95
      // Predicated region
      $region9: #{tpu_custom_call.1} parent=5 // pred_check
        _
      $region10: #{tpu_custom_call.1} parent=5 // pred_check_branch
        %98 = sbr.rel (%p95) target = $region12
      $region11: #{tpu_custom_call.1} parent=5 // pred_region
        %s99 = ssub.s32 %s12, 1
        // Predicated region
        $region13: #{tpu_custom_call.1} parent=11 // pred_check
          %p100 = pneg %p33
        $region14: #{tpu_custom_call.1} parent=11 // pred_check_branch
          %102 = sbr.rel (%p100) target = $region16
        $region15: #{tpu_custom_call.1} parent=11 // pred_region
          %s104 = ssub.s32 32, 32
          %105 = vsyncadd [#allocation4], %s104
          %s107 = sshll.u32 %s0, 4
          %s108 = int_to_ptr.vmem [resolvable:$true] %s107
          %110 = dma.vmem_to_smem %s108, 32, [#allocation2], [#allocation4]
        $region16: #{tpu_custom_call.1} parent=11 // pred_fallthru
          _
      $region12: #{tpu_custom_call.1} parent=5 // pred_fallthru
        _
      %p111 = scmp.lt.s32.totalorder %s12, 2
      // Predicated region
      $region17: #{tpu_custom_call.1} parent=5 // pred_check
        %p112 = pneg %p111
      $region18: #{tpu_custom_call.1} parent=5 // pred_check_branch
        %114 = sbr.rel (%p112) target = $region20
      $region19: #{tpu_custom_call.1} parent=5 // pred_region
        // Predicated region
        $region21: #{tpu_custom_call.1} parent=19 // pred_check
          %p115 = pneg %p53
        $region22: #{tpu_custom_call.1} parent=19 // pred_check_branch
          %117 = sbr.rel (%p115) target = $region24
        $region23: #{tpu_custom_call.1} parent=19 // pred_region
          %p118 = scmp.lt.s32.totalorder %s12, 1
          %s119 = scalar_select %p118, %s12, 1
          %s120 = smul.addr %s119, 4
          %s121 = scalar_lea.vmem %s1, %s120
        $region24: #{tpu_custom_call.1} parent=19 // pred_fallthru
          _
      $region20: #{tpu_custom_call.1} parent=5 // pred_fallthru
        _
      %p122 = scmp.le.s32.totalorder 1, %s12
      %p123 = scmp.lt.s32.totalorder %s12, 3
      %p124 = pnand %p122, %p123
      %p125 = pneg %p124
      // Predicated region
      $region25: #{tpu_custom_call.1} parent=5 // pred_check
        _
      $region26: #{tpu_custom_call.1} parent=5 // pred_check_branch
        %127 = sbr.rel (%p124) target = $region28
      $region27: #{tpu_custom_call.1} parent=5 // pred_region
        %s128 = ssub.s32 %s12, 1
        // Predicated region
        $region29: #{tpu_custom_call.1} parent=27 // pred_check
          %p129 = pneg %p33
        $region30: #{tpu_custom_call.1} parent=27 // pred_check_branch
          %131 = sbr.rel (%p129) target = $region32
        $region31: #{tpu_custom_call.1} parent=27 // pred_region
          %132 = dma.done [#allocation4], 32
        $region32: #{tpu_custom_call.1} parent=27 // pred_fallthru
          _
        %133 = sfence
        %p134 = pneg %p33
        %p135 = pneg %p30
        %p136 = scmp.lt.s32.totalorder %s17, 1
        %s137 = scalar_select %p136, %s17, 1
        %s138 = smul.addr %s137, 4
        %s139 = scalar_lea.vmem %s1, %s138
        %p140 = pneg %p59
        %p141 = pneg %p56
        %p142 = pneg %p85
        %p143 = pneg %p82
        %s144 = sand.u32 %s72, 1
        %s145 = scalar_lea.sflag [#allocation3], %s144
        %s146 = sand.u32 %s72, 1
        %s147 = smul.addr %s146, 2
        %s148 = scalar_lea.vmem [#allocation5], %s147
        %p149 = scmp.lt.s32.totalorder %s17, 1
        %s150 = scalar_select %p149, %s17, 1
        %s151 = smul.addr %s150, 4
        %s152 = scalar_lea.vmem %s1, %s151
        %s153 = smul.u32 %s17, 128
        %s154 = sld [smem:[#allocation2 + %s153]]
        %s155 = sadd.s32 %s153, 1
        %s156 = sld [smem:[#allocation2 + %s155]]
        %s157 = sadd.s32 %s153, 2
        %s158 = sld [smem:[#allocation2 + %s157]]
        %s159 = sadd.s32 %s153, 3
        %s160 = sld [smem:[#allocation2 + %s159]]
        %s161 = sadd.s32 %s153, 4
        %s162 = sld [smem:[#allocation2 + %s161]]
        %s163 = sadd.s32 %s153, 5
        %s164 = sld [smem:[#allocation2 + %s163]]
        %s165 = sadd.s32 %s153, 6
        %s166 = sld [smem:[#allocation2 + %s165]]
        %v167 = vld [vmem:[%s152] sm:$0x1]
        %v168 = vld [vmem:[%s152 + $0x1] sm:$0x1]
        %v169 = vld [vmem:[%s152 + $0x2] sm:$0x1]
        %v170 = vstv %s162
        %v171 = vmul.f32 %v167, %v170
        %v172 = vstv %s164
        %v173 = vmul.f32 %v168, %v172
        %v174 = vadd.f32 %v171, %v173
        %v175 = vstv %s166
        %v176 = vmul.f32 %v169, %v175
        %v177 = vadd.f32 %v174, %v176
        %v178 = vstv %s160
        %v179 = vmul.f32 %v167, %v178
        %v180 = vmul.f32 %v168, %v175
        %v181 = vsub.f32 %v179, %v180
        %v182 = vmul.f32 %v169, %v172
        %v183 = vadd.f32 %v181, %v182
        %v184 = vmul.f32 %v167, %v175
        %v185 = vmul.f32 %v168, %v178
        %v186 = vadd.f32 %v184, %v185
        %v187 = vmul.f32 %v169, %v170
        %v188 = vsub.f32 %v186, %v187
        %v189 = vsub.f32 0.0, %v167
        %v190 = vmul.f32 %v189, %v172
        %v191 = vmul.f32 %v168, %v170
        %v192 = vadd.f32 %v190, %v191
        %v193 = vmul.f32 %v169, %v178
        %v194 = vadd.f32 %v192, %v193
        %v195 = vmul.f32 %v178, %v183
        %v196 = vmul.f32 %v170, %v177
        %v197 = vadd.f32 %v195, %v196
        %v198 = vmul.f32 %v172, %v194
        %v199 = vadd.f32 %v197, %v198
        %v200 = vmul.f32 %v175, %v188
        %v201 = vsub.f32 %v199, %v200
        %v202 = vmul.f32 %v178, %v188
        %v203 = vmul.f32 %v170, %v194
        %v204 = vsub.f32 %v202, %v203
        %v205 = vmul.f32 %v172, %v177
        %v206 = vadd.f32 %v204, %v205
        %v207 = vmul.f32 %v175, %v183
        %v208 = vadd.f32 %v206, %v207
        %v209 = vmul.f32 %v178, %v194
        %v210 = vmul.f32 %v170, %v188
        %v211 = vadd.f32 %v209, %v210
        %v212 = vmul.f32 %v172, %v183
        %v213 = vsub.f32 %v211, %v212
        %v214 = vmul.f32 %v175, %v177
        %v215 = vadd.f32 %v213, %v214
        %v216 = vstv %s154
        %v217 = vmul.f32 %v216, %v201
        %v218 = vstv %s156
        %v219 = vadd.f32 %v217, %v218
        %v220 = vmul.f32 %v216, %v208
        %v221 = vstv %s158
        %v222 = vadd.f32 %v220, %v221
        %v223 = vsub.f32 0.0, %v222
        %v224 = vmul.f32 %v216, %v215
        %v225 = vadd.f32 %v224, 5.0
        %v226 = vsub.f32 %v225, -2.732
        %v227 = vmax.f32 %v226, 0.001
        %v228 = vmul.f32 %v227, 0.57735026
        %v229 = vrcp.pop %v228
        %v230 = vmul.f32 1.0, %v229
        %v231 = vmul.f32 %v219, %v230
        %232 = vst [vmem:[%s148] sm:$0x1] %v231
        %v233 = vmul.f32 %v223, %v230
        %234 = vst [vmem:[%s148 + $0x1] sm:$0x1] %v233
        %s235 = sand.u32 %s72, 1
        %s236 = scalar_lea.sflag [#allocation3], %s235
        %s237 = sand.u32 %s72, 1
        %s238 = smul.addr %s237, 2
        %s239 = scalar_lea.vmem [#allocation5], %s238
        // Predicated region
        $region33: #{tpu_custom_call.1} parent=27 // pred_check
          %p240 = pneg %p82
        $region34: #{tpu_custom_call.1} parent=27 // pred_check_branch
          %242 = sbr.rel (%p240) target = $region36
        $region35: #{tpu_custom_call.1} parent=27 // pred_region
          %s244 = ssub.s32 32, 32
          %245 = vsyncadd %s236, %s244
          %s246 = smul.addr %s17, 32
          %s247 = scalar_lea.hbm %s2, %s246
          %s249 = sshll.u32 %s239, 4
          %s250 = int_to_ptr.vmem [resolvable:$true] %s249
          %252 = dma.vmem_to_hbm [thread:$0]  %s250, 32, %s247, %s236
        $region36: #{tpu_custom_call.1} parent=27 // pred_fallthru
          _
      $region28: #{tpu_custom_call.1} parent=5 // pred_fallthru
        _
      %p253 = scmp.le.s32.totalorder 2, %s12
      // Predicated region
      $region37: #{tpu_custom_call.1} parent=5 // pred_check
        %p254 = pneg %p253
      $region38: #{tpu_custom_call.1} parent=5 // pred_check_branch
        %256 = sbr.rel (%p254) target = $region40
      $region39: #{tpu_custom_call.1} parent=5 // pred_region
        %s257 = ssub.s32 %s12, 2
        // Predicated region
        $region41: #{tpu_custom_call.1} parent=39 // pred_check
          %p258 = pneg %p88
        $region42: #{tpu_custom_call.1} parent=39 // pred_check_branch
          %260 = sbr.rel (%p258) target = $region44
        $region43: #{tpu_custom_call.1} parent=39 // pred_region
          %s261 = sand.u32 %s73, 1
          %s262 = scalar_lea.sflag [#allocation3], %s261
          %s263 = sand.u32 %s73, 1
          %s264 = smul.addr %s263, 2
          %s265 = scalar_lea.vmem [#allocation5], %s264
          %266 = dma.done %s262, 32
        $region44: #{tpu_custom_call.1} parent=39 // pred_fallthru
          _
      $region40: #{tpu_custom_call.1} parent=5 // pred_fallthru
        _
    $region6: #{tpu_custom_call.1} parent=1 // loop_footer
      %s16 = sadd.s32 1, %s12
    $region7: #{tpu_custom_call.1} parent=1 // loop_footer_branch
      %11 = sbr.rel target = $region3
    $region8: #{tpu_custom_call.1} parent=1 // loop_exit
      _
    %267 = vsyncpa [#allocation3], 1
    %s268 = scalar_lea.sflag [#allocation3], 1
    %269 = vsyncpa %s268, 1
    %270 = vsyncpa [#allocation4], 1
    %s271 = scalar_lea.sflag [#allocation4], 1
    %272 = vsyncpa %s271, 1

</llo_original>
